<compile_context>
chip_gen: v7x
topology: tpu7x:2x2x1
jax: 0.10.0
libtpu: 0.0.40
codegen_flags: <defaults>
</compile_context>

<pallas_src>
import functools

import jax
import jax.numpy as jnp
from jax.experimental import pallas as pl
from jax.experimental.pallas import tpu as pltpu


def _round_up(x, m):
    return ((x + m - 1) // m) * m


def _is_v7_chip():
    try:
        kind = jax.devices()[0].device_kind.lower()
    except Exception:
        return False
    return ("v7" in kind) or ("7x" in kind)


def graphormer_head_kernel(bidx_ref, x_ref, inv_cnt_ref, w_ref, out_ref, acc_ref,
                           *, n_rows):
    c = pl.program_id(0)
    k = pl.program_id(1)
    kt = pl.num_programs(1)

    @pl.when(k == 0)
    def _init():
        acc_ref[...] = jnp.zeros_like(acc_ref)

    tn, d = x_ref.shape
    g = acc_ref.shape[0]

    # LayerNorm statistics (affine folded into the output linear in the
    # wrapper). One-pass sum / sum-of-squares; all VPU math stays f32 (bf16 is
    # used only on MXU operands, so v5e's f32-only VPU/EUP path is respected).
    x = x_ref[...].astype(jnp.float32)                               # [TN, D]
    inv_d = 1.0 / d
    s = jnp.sum(x, axis=-1, keepdims=True)
    ss = jnp.sum(x * x, axis=-1, keepdims=True)
    mean = s * inv_d
    var = jnp.maximum(ss * inv_d - mean * mean, 0.0)
    z = (x - mean) * jax.lax.rsqrt(var + 1e-5)                       # torch LN eps

    # Ragged-tail masking: zero the rows past N in this tile. Zeroing z itself
    # is required -- zero one-hot columns alone would still let 0*NaN reach the
    # f32 accumulator.
    blk = c * kt + k
    row_ids = jax.lax.broadcasted_iota(jnp.int32, (tn, 1), 0) + blk * tn
    z = jnp.where(row_ids < n_rows, z, 0.0).astype(jnp.bfloat16)

    # Build the [G, TN] 0/1 one-hot in-kernel from the int32 node->graph ids
    # (no dense [G, N] matrix ever touches HBM). Garbage ids in masked rows are
    # harmless because those z rows are already zero.
    onehot = (jax.lax.broadcasted_iota(jnp.int32, (g, tn), 0)
              == bidx_ref[...]).astype(jnp.bfloat16)                 # [G, TN]

    # Per-graph sum of this node tile on the MXU, exact f32 accumulation.
    acc_ref[...] += jnp.dot(onehot, z, preferred_element_type=jnp.float32)

    @pl.when(k == kt - 1)
    def _finalize():
        pooled = acc_ref[...] * inv_cnt_ref[...]                     # mean pool, [G, D]
        out = jnp.dot(pooled, w_ref[...],                            # [G, dim_out]
                      preferred_element_type=jnp.float32)
        out_ref[...] = out[None].astype(out_ref.dtype)               # [1, G, dim_out]


def graphormer_head(x, batch_idx, y, gamma, beta, w, b, num_graphs,
                    *, node_tile=None, num_splits=None):
    """Returns (pred, label) like GraphormerHead.forward (mean graph pooling)."""
    # TODO(synk): cfg.model.graph_pooling is config-selected; this kernel
    # implements 'mean' pooling (sum/max pooling would need a different
    # accumulator/finalize).
    N, D = x.shape
    dim_out = w.shape[1]
    G = num_graphs
    is_v7 = _is_v7_chip()

    # Generation-aware defaults: one node-split per TensorCore (2 on v7x,
    # 1 on single-TC v5e/v6e); node tile sized for the VMEM budget
    # (64 MiB physical on v7x vs 128 MiB on v5e/v6e).
    if num_splits is None:
        num_splits = 2 if is_v7 else 1
    if node_tile is None:
        node_tile = 512 if (is_v7 and D >= 4096) else 1024

    # Node tiling. Either tn is a multiple of 128 (lane axis of the batch-idx
    # block, sublane axis of the x block) or tn == N (single full block), so
    # the (8,128) BlockSpec constraint always holds. x is NOT padded: the
    # ragged tail is handled by in-kernel row masking + a clamped index map.
    if N <= node_tile:
        tn = N
    else:
        tn = min(node_tile, _round_up(pl.cdiv(N, num_splits), 128))
        tn = max(128, (tn // 128) * 128)
    kb = pl.cdiv(N, tn)                          # node blocks that cover data
    num_splits = max(1, min(num_splits, kb))
    kt = pl.cdiv(kb, num_splits)

    # Plain-JAX glue (tiny, O(N) + O(G*D)): per-graph reciprocal counts, the
    # LayerNorm affine folded into the linear (exact: pooling and the linear
    # are both linear maps), and the node->graph id row vector.
    counts = jnp.bincount(batch_idx.astype(jnp.int32), length=G).astype(jnp.float32)
    inv_counts = (1.0 / jnp.maximum(counts, 1.0)).reshape(G, 1)
    w_fold = (gamma.reshape(D, 1) * w).astype(jnp.float32)           # [D, dim_out]
    b_fold = (b + beta @ w).astype(jnp.float32)                      # [dim_out]
    bidx2 = batch_idx.astype(jnp.int32).reshape(1, N)

    clamp = kb - 1

    def bidx_map(c, k):
        return (0, jnp.minimum(c * kt + k, clamp))

    def x_map(c, k):
        return (jnp.minimum(c * kt + k, clamp), 0)

    # VMEM budget: double-buffered x / batch-idx tiles + accumulator + params,
    # with a generation-aware cap (v7x has only 64 MiB VMEM).
    tile_bytes = (2 * (tn * D * 4 + tn * 4) + G * D * 4
                  + G * 4 + D * dim_out * 4 + 2 * G * dim_out * 4)
    cap = (48 << 20) if is_v7 else (100 << 20)
    vmem_limit = int(min(cap, max(32 << 20, 4 * tile_bytes)))

    grid_spec = pltpu.PrefetchScalarGridSpec(
        num_scalar_prefetch=0,
        grid=(num_splits, kt),
        in_specs=[
            pl.BlockSpec((1, tn), bidx_map),                         # node->graph ids
            pl.BlockSpec((tn, D), x_map),                            # x tile
            pl.BlockSpec((G, 1), lambda c, k: (0, 0)),               # 1/counts
            pl.BlockSpec((D, dim_out), lambda c, k: (0, 0)),         # gamma-folded W
        ],
        out_specs=pl.BlockSpec((1, G, dim_out), lambda c, k: (c, 0, 0)),
        scratch_shapes=[pltpu.VMEM((G, D), jnp.float32)],
    )

    partials = pl.pallas_call(
        functools.partial(graphormer_head_kernel, n_rows=N),
        out_shape=jax.ShapeDtypeStruct((num_splits, G, dim_out), jnp.float32),
        grid_spec=grid_spec,
        compiler_params=pltpu.CompilerParams(
            dimension_semantics=("parallel", "arbitrary"),
            vmem_limit_bytes=vmem_limit),
    )(bidx2, x, inv_counts, w_fold)

    # Tiny epilogue: combine per-split partial linears and add the folded bias
    # once. Exact because the in-kernel linear has no bias term.
    pred = partials.sum(axis=0) + b_fold.reshape(1, dim_out)
    return pred, y


if __name__ == "__main__":
    # Small synthetic graph batch: 2 graphs (6 + 10 nodes), dim_in=32, dim_out=1.
    N, D, G, DIM_OUT = 16, 32, 2, 1
    key = jax.random.PRNGKey(0)
    kx, kw, kb_, ky, kg, kbe = jax.random.split(key, 6)

    x = jax.random.normal(kx, (N, D), dtype=jnp.float32)              # batch.x
    batch_idx = jnp.concatenate([jnp.zeros(6, jnp.int32),
                                 jnp.ones(10, jnp.int32)])            # batch.batch
    y = jax.random.normal(ky, (G, DIM_OUT), dtype=jnp.float32)        # batch.y

    # Non-trivial LN affine so the gamma/beta -> linear folding is exercised.
    gamma = 1.0 + 0.1 * jax.random.normal(kg, (D,), dtype=jnp.float32)
    beta = 0.1 * jax.random.normal(kbe, (D,), dtype=jnp.float32)
    w = jax.random.normal(kw, (D, DIM_OUT), dtype=jnp.float32) * 0.1
    b = jax.random.normal(kb_, (DIM_OUT,), dtype=jnp.float32) * 0.1

    pred, label = graphormer_head(x, batch_idx, y, gamma, beta, w, b, num_graphs=G)
    jax.block_until_ready(pred)

    # Plain-f32 reference (kernel uses bf16 only on MXU operands).
    mean = x.mean(-1, keepdims=True)
    var = ((x - mean) ** 2).mean(-1, keepdims=True)
    ln = (x - mean) / jnp.sqrt(var + 1e-5) * gamma + beta
    pooled = jnp.stack([ln[:6].mean(0), ln[6:].mean(0)])
    ref = pooled @ w + b
    assert pred.shape == (G, DIM_OUT)
    assert label.shape == (G, DIM_OUT)
    assert jnp.allclose(pred, ref, atol=5e-2, rtol=5e-2), (pred, ref)

    print("KERNEL_OK")
</pallas_src>

<mosaic_0001>
module attributes {stable_mosaic.version = 11 : i64} {
  func.func @graphormer_head_kernel(%arg0: i32, %arg1: i32, %arg2: memref<1x16xi32, #tpu.memory_space<vmem>>, %arg3: memref<16x32xf32, #tpu.memory_space<vmem>>, %arg4: memref<2x1xf32, #tpu.memory_space<vmem>>, %arg5: memref<32x1xf32, #tpu.memory_space<vmem>>, %arg6: memref<1x2x1xf32, #tpu.memory_space<vmem>>, %arg7: memref<2x32xf32, #tpu.memory_space<vmem>>) attributes {dimension_semantics = [#tpu.dimension_semantics<parallel>, #tpu.dimension_semantics<arbitrary>], iteration_bounds = array<i64: 1, 1>, scalar_prefetch = 0 : i64, scratch_operands = 1 : i64, tpu.core_type = #tpu.core_type<tc>, window_params = [{transform_indices = @transform_0, window_bounds = array<i64: 1, 16>}, {transform_indices = @transform_1, window_bounds = array<i64: 16, 32>}, {pipeline_mode = #tpu.pipeline_mode<synchronous>, transform_indices = @transform_2, window_bounds = array<i64: 2, 1>}, {pipeline_mode = #tpu.pipeline_mode<synchronous>, transform_indices = @transform_3, window_bounds = array<i64: 32, 1>}, {transform_indices = @transform_4, window_bounds = array<i64: 1, 2, 1>}]} {
    %c0_i32 = arith.constant 0 : i32
    %0 = arith.cmpi eq, %arg1, %c0_i32 : i32
    %1 = arith.extui %0 : i1 to i32
    %c0_i32_0 = arith.constant 0 : i32
    %2 = arith.cmpi ne, %1, %c0_i32_0 : i32
    scf.if %2 {
      %cst_18 = arith.constant 0.000000e+00 : f32
      %51 = vector.broadcast %cst_18 : f32 to vector<2x32xf32>
      %c0_19 = arith.constant 0 : index
      %c0_20 = arith.constant 0 : index
      %52 = vector.load %arg7[%c0_19, %c0_20] : memref<2x32xf32, #tpu.memory_space<vmem>>, vector<2x32xf32>
      tpu.vector_store %arg7[%c0_19, %c0_20], %51 {strides = array<i32>} : memref<2x32xf32, #tpu.memory_space<vmem>>, vector<2x32xf32>,
    } else {
    }
    %c0 = arith.constant 0 : index
    %c0_1 = arith.constant 0 : index
    %3 = vector.load %arg3[%c0, %c0_1] : memref<16x32xf32, #tpu.memory_space<vmem>>, vector<16x32xf32>
    %cst = arith.constant dense<0.000000e+00> : vector<16xf32>
    %4 = vector.multi_reduction <add>, %3, %cst [1] : vector<16x32xf32> to vector<16xf32>
    %5 = vector.shape_cast %4 : vector<16xf32> to vector<16x1xf32>
    %6 = arith.mulf %3, %3 : vector<16x32xf32>
    %cst_2 = arith.constant dense<0.000000e+00> : vector<16xf32>
    %7 = vector.multi_reduction <add>, %6, %cst_2 [1] : vector<16x32xf32> to vector<16xf32>
    %8 = vector.shape_cast %7 : vector<16xf32> to vector<16x1xf32>
    %cst_3 = arith.constant 3.125000e-02 : f32
    %9 = vector.broadcast %cst_3 : f32 to vector<16x1xf32>
    %10 = arith.mulf %5, %9 : vector<16x1xf32>
    %cst_4 = arith.constant 3.125000e-02 : f32
    %11 = vector.broadcast %cst_4 : f32 to vector<16x1xf32>
    %12 = arith.mulf %8, %11 : vector<16x1xf32>
    %13 = arith.mulf %10, %10 : vector<16x1xf32>
    %14 = arith.subf %12, %13 : vector<16x1xf32>
    %cst_5 = arith.constant 0.000000e+00 : f32
    %15 = vector.broadcast %cst_5 : f32 to vector<16x1xf32>
    %16 = arith.maximumf %14, %15 : vector<16x1xf32>
    %17 = vector.broadcast %10 : vector<16x1xf32> to vector<16x32xf32>
    %18 = arith.subf %3, %17 : vector<16x32xf32>
    %cst_6 = arith.constant 9.99999974E-6 : f32
    %19 = vector.broadcast %cst_6 : f32 to vector<16x1xf32>
    %20 = arith.addf %16, %19 : vector<16x1xf32>
    %21 = math.rsqrt %20 : vector<16x1xf32>
    %22 = vector.broadcast %21 : vector<16x1xf32> to vector<16x32xf32>
    %23 = arith.mulf %18, %22 : vector<16x32xf32>
    %c1_i32 = arith.constant 1 : i32
    %24 = arith.muli %arg0, %c1_i32 : i32
    %25 = arith.addi %24, %arg1 : i32
    %26 = tpu.iota {dimensions = array<i32: 0>} : vector<16x1xi32>
    %c16_i32 = arith.constant 16 : i32
    %27 = arith.muli %25, %c16_i32 : i32
    %28 = vector.broadcast %27 : i32 to vector<16x1xi32>
    %29 = arith.addi %26, %28 : vector<16x1xi32>
    %c16_i32_7 = arith.constant 16 : i32
    %30 = vector.broadcast %c16_i32_7 : i32 to vector<16x1xi32>
    %31 = arith.cmpi slt, %29, %30 : vector<16x1xi32>
    %cst_8 = arith.constant 0.000000e+00 : f32
    %32 = vector.shape_cast %31 : vector<16x1xi1> to vector<16x1xi1>
    %33 = vector.broadcast %32 : vector<16x1xi1> to vector<16x32xi1>
    %34 = vector.broadcast %cst_8 : f32 to vector<16x32xf32>
    %35 = arith.select %33, %23, %34 : vector<16x32xi1>, vector<16x32xf32>
    %36 = arith.truncf %35 : vector<16x32xf32> to vector<16x32xbf16>
    %37 = tpu.iota {dimensions = array<i32: 0>} : vector<2x16xi32>
    %c0_9 = arith.constant 0 : index
    %c0_10 = arith.constant 0 : index
    %38 = vector.load %arg2[%c0_9, %c0_10] : memref<1x16xi32, #tpu.memory_space<vmem>>, vector<1x16xi32>
    %39 = vector.broadcast %38 : vector<1x16xi32> to vector<2x16xi32>
    %40 = arith.cmpi eq, %37, %39 : vector<2x16xi32>
    %41 = arith.extui %40 : vector<2x16xi1> to vector<2x16xi32>
    %42 = arith.sitofp %41 : vector<2x16xi32> to vector<2x16xf32>
    %43 = arith.truncf %42 : vector<2x16xf32> to vector<2x16xbf16>
    %c0_11 = arith.constant 0 : index
    %c0_12 = arith.constant 0 : index
    %44 = vector.load %arg7[%c0_11, %c0_12] : memref<2x32xf32, #tpu.memory_space<vmem>>, vector<2x32xf32>
    %cst_13 = arith.constant dense<0.000000e+00> : vector<2x32xf32>
    %45 = tpu.matmul %43, %36, %cst_13 {dimension_numbers = #tpu.dot_dimension_numbers<[1], [0], [0], [1], [0, 0, 1, 1], [], []>} : vector<2x16xbf16>, vector<16x32xbf16>, vector<2x32xf32> -> vector<2x32xf32>
    %46 = arith.addf %44, %45 : vector<2x32xf32>
    %c0_14 = arith.constant 0 : index
    %c0_15 = arith.constant 0 : index
    %47 = vector.load %arg7[%c0_14, %c0_15] : memref<2x32xf32, #tpu.memory_space<vmem>>, vector<2x32xf32>
    tpu.vector_store %arg7[%c0_14, %c0_15], %46 {strides = array<i32>} : memref<2x32xf32, #tpu.memory_space<vmem>>, vector<2x32xf32>,
    %c0_i32_16 = arith.constant 0 : i32
    %48 = arith.cmpi eq, %arg1, %c0_i32_16 : i32
    %49 = arith.extui %48 : i1 to i32
    %c0_i32_17 = arith.constant 0 : i32
    %50 = arith.cmpi ne, %49, %c0_i32_17 : i32
    scf.if %50 {
      %c0_18 = arith.constant 0 : index
      %c0_19 = arith.constant 0 : index
      %51 = vector.load %arg7[%c0_18, %c0_19] : memref<2x32xf32, #tpu.memory_space<vmem>>, vector<2x32xf32>
      %c0_20 = arith.constant 0 : index
      %c0_21 = arith.constant 0 : index
      %52 = vector.load %arg4[%c0_20, %c0_21] : memref<2x1xf32, #tpu.memory_space<vmem>>, vector<2x1xf32>
      %53 = vector.broadcast %52 : vector<2x1xf32> to vector<2x32xf32>
      %54 = arith.mulf %51, %53 : vector<2x32xf32>
      %c0_22 = arith.constant 0 : index
      %c0_23 = arith.constant 0 : index
      %55 = vector.load %arg5[%c0_22, %c0_23] : memref<32x1xf32, #tpu.memory_space<vmem>>, vector<32x1xf32>
      %cst_24 = arith.constant dense<0.000000e+00> : vector<2x1xf32>
      %56 = tpu.matmul %54, %55, %cst_24 {dimension_numbers = #tpu.dot_dimension_numbers<[1], [0], [0], [1], [0, 0, 1, 1], [], []>} : vector<2x32xf32>, vector<32x1xf32>, vector<2x1xf32> -> vector<2x1xf32>
      %57 = vector.shape_cast %56 : vector<2x1xf32> to vector<1x2x1xf32>
      %c0_25 = arith.constant 0 : index
      %c0_26 = arith.constant 0 : index
      %c0_27 = arith.constant 0 : index
      %58 = vector.load %arg6[%c0_25, %c0_26, %c0_27] : memref<1x2x1xf32, #tpu.memory_space<vmem>>, vector<1x2x1xf32>
      tpu.vector_store %arg6[%c0_25, %c0_26, %c0_27], %57 {strides = array<i32>} : memref<1x2x1xf32, #tpu.memory_space<vmem>>, vector<1x2x1xf32>,
    } else {
    }
    return
  }
  func.func @transform_0(%arg0: i32, %arg1: i32) -> (i32, i32) {
    %c1_i32 = arith.constant 1 : i32
    %0 = arith.muli %arg0, %c1_i32 : i32
    %1 = arith.addi %0, %arg1 : i32
    %c0_i32 = arith.constant 0 : i32
    %2 = arith.minsi %1, %c0_i32 : i32
    %c0_i32_0 = arith.constant 0 : i32
    %c0_i32_1 = arith.constant 0 : i32
    return %c0_i32_0, %2 : i32, i32
  }
  func.func @transform_1(%arg0: i32, %arg1: i32) -> (i32, i32) {
    %c1_i32 = arith.constant 1 : i32
    %0 = arith.muli %arg0, %c1_i32 : i32
    %1 = arith.addi %0, %arg1 : i32
    %c0_i32 = arith.constant 0 : i32
    %2 = arith.minsi %1, %c0_i32 : i32
    %c0_i32_0 = arith.constant 0 : i32
    %c0_i32_1 = arith.constant 0 : i32
    return %2, %c0_i32_0 : i32, i32
  }
  func.func @transform_2(%arg0: i32, %arg1: i32) -> (i32, i32) {
    %c0_i32 = arith.constant 0 : i32
    %c0_i32_0 = arith.constant 0 : i32
    %c0_i32_1 = arith.constant 0 : i32
    return %c0_i32, %c0_i32_0 : i32, i32
  }
  func.func @transform_3(%arg0: i32, %arg1: i32) -> (i32, i32) {
    %c0_i32 = arith.constant 0 : i32
    %c0_i32_0 = arith.constant 0 : i32
    %c0_i32_1 = arith.constant 0 : i32
    return %c0_i32, %c0_i32_0 : i32, i32
  }
  func.func @transform_4(%arg0: i32, %arg1: i32) -> (i32, i32, i32) {
    %c0_i32 = arith.constant 0 : i32
    %c0_i32_0 = arith.constant 0 : i32
    %c0_i32_1 = arith.constant 0 : i32
    return %arg0, %c0_i32, %c0_i32_0 : i32, i32, i32
  }
}

</mosaic_0001>

<llo_original>
// kernel: tpu_custom_call.1
$region0: #{tpu_custom_call.1}
  #allocation0 [shape = 'u32[]', space=smem, size = 0x4, offset = 0x4, fixed_abs, tag = 'smem constant byte address 0x4 - core index']
  #allocation1 [shape = 'u32[144,128]{1,0:T(1,128)}', space=vmem, size = 0x12000, scoped, tag = 'internal scratch']
  #allocation2 [shape = 'f32[2,32]{1,0:T(2,128)}', space=vmem, size = 0x400, scoped, tag = 'scratch operand']
  %s0 = inlined_call_operand.vmem [shape: s32[1,16], index: 0, kind: input, shape index: {}]
  %s1 = inlined_call_operand.vmem [shape: f32[16,32], index: 1, kind: input, shape index: {}]
  %s2 = inlined_call_operand.vmem [shape: f32[2,1], index: 2, kind: input, shape index: {}]
  %s3 = inlined_call_operand.vmem [shape: f32[32,1], index: 3, kind: input, shape index: {}]
  %s4 = inlined_call_operand.vmem [shape: f32[1,2,1], index: 4, kind: output, shape index: {}]
  %s5 = sld [smem:[#allocation0]]
  $region34: #{tpu_custom_call.1} parent=0
    _
  %s7 = ssub.s32 1, %s5
  %s8 = scalar_select 0, %s7, %s5
  // Predicated region
  $region2: #{tpu_custom_call.1} parent=0 // pred_check
    _
  $region3: #{tpu_custom_call.1} parent=0 // pred_check_branch
    %10 = sbr.rel (0) target = $region5
  $region4: #{tpu_custom_call.1} parent=0 // pred_region
    %s11 = sadd.s32 0, 0
    %p12 = scmp.lt.s32.totalorder %s11, 0
    %s13 = scalar_select %p12, %s11, 0
    %p14 = scmp.lt.s32.totalorder %s13, 0
    %s15 = scalar_select %p14, %s13, 0
    %s16 = scalar_lea.vmem %s0, %s15
    %s17 = sadd.s32 0, 0
    %p18 = scmp.lt.s32.totalorder %s17, 0
    %s19 = scalar_select %p18, %s17, 0
  $region5: #{tpu_custom_call.1} parent=0 // pred_fallthru
    _
  // Predicated region
  $region6: #{tpu_custom_call.1} parent=0 // pred_check
    _
  $region7: #{tpu_custom_call.1} parent=0 // pred_check_branch
    %21 = sbr.rel (0) target = $region9
  $region8: #{tpu_custom_call.1} parent=0 // pred_region
    %s22 = sadd.s32 0, 0
    %p23 = scmp.lt.s32.totalorder %s22, 0
    %s24 = scalar_select %p23, %s22, 0
    %s25 = smul.u32 2, %s24
    %p26 = scmp.lt.s32.totalorder %s25, 1
    %s27 = scalar_select %p26, %s25, 1
    %s28 = smul.addr %s27, 8
    %s29 = scalar_lea.vmem %s1, %s28
    %s30 = sadd.s32 0, 0
    %p31 = scmp.lt.s32.totalorder %s30, 0
    %s32 = scalar_select %p31, %s30, 0
    %s33 = smul.u32 2, %s32
  $region9: #{tpu_custom_call.1} parent=0 // pred_fallthru
    _
  // Predicated region
  $region10: #{tpu_custom_call.1} parent=0 // pred_check
    _
  $region11: #{tpu_custom_call.1} parent=0 // pred_check_branch
    %35 = sbr.rel (0) target = $region13
  $region12: #{tpu_custom_call.1} parent=0 // pred_region
    _
  $region13: #{tpu_custom_call.1} parent=0 // pred_fallthru
    _
  // Predicated region
  $region14: #{tpu_custom_call.1} parent=0 // pred_check
    _
  $region15: #{tpu_custom_call.1} parent=0 // pred_check_branch
    %37 = sbr.rel (0) target = $region17
  $region16: #{tpu_custom_call.1} parent=0 // pred_region
    _
  $region17: #{tpu_custom_call.1} parent=0 // pred_fallthru
    _
  %s38 = sadd.s32 0, 0
  %p39 = scmp.lt.s32.totalorder %s38, 0
  %s40 = scalar_select %p39, %s38, 0
  %p41 = scmp.lt.s32.totalorder %s40, 0
  %s42 = scalar_select %p41, %s40, 0
  %s43 = scalar_lea.vmem %s0, %s42
  %s44 = sadd.s32 0, 0
  %p45 = scmp.lt.s32.totalorder %s44, 0
  %s46 = scalar_select %p45, %s44, 0
  %s47 = smul.u32 2, %s46
  %p48 = scmp.lt.s32.totalorder %s47, 1
  %s49 = scalar_select %p48, %s47, 1
  %s50 = smul.addr %s49, 8
  %s51 = scalar_lea.vmem %s1, %s50
  %s52 = sadd.s32 0, 0
  %p53 = scmp.lt.s32.totalorder %s52, 0
  %s54 = scalar_select %p53, %s52, 0
  %p55 = scmp.lt.s32.totalorder %s54, 0
  %s56 = scalar_select %p55, %s54, 0
  %s57 = scalar_lea.vmem %s0, %s56
  %s58 = sadd.s32 0, 0
  %p59 = scmp.lt.s32.totalorder %s58, 0
  %s60 = scalar_select %p59, %s58, 0
  %s61 = sadd.s32 0, 0
  %p62 = scmp.lt.s32.totalorder %s61, 0
  %s63 = scalar_select %p62, %s61, 0
  %s64 = smul.u32 2, %s63
  %p65 = scmp.lt.s32.totalorder %s64, 1
  %s66 = scalar_select %p65, %s64, 1
  %s67 = smul.addr %s66, 8
  %s68 = scalar_lea.vmem %s1, %s67
  %s69 = sadd.s32 0, 0
  %p70 = scmp.lt.s32.totalorder %s69, 0
  %s71 = scalar_select %p70, %s69, 0
  %s72 = smul.u32 2, %s71
  %p74 = scmp.eq.s32.totalorder 0, 0
  // Predicated region
  $region18: #{tpu_custom_call.1} parent=0 // pred_check
    %p75 = pneg %p74
  $region19: #{tpu_custom_call.1} parent=0 // pred_check_branch
    %77 = sbr.rel (%p75) target = $region21
  $region20: #{tpu_custom_call.1} parent=0 // pred_region
    %vm78 = vcmask 254976
    %79 = vst.msk [vmem:[#allocation2] sm:$0x3] %vm78, 0.0
  $region21: #{tpu_custom_call.1} parent=0 // pred_fallthru
    _
  %v80 = vld [vmem:[%s68] sm:$0xff]
  %v81 = vld [vmem:[%s68 + $0x8] sm:$0xff]
  %vm82 = vcmask 261120
  %v83 = vsel %vm82, %v80, 0.0
  %84 = vadd.xlane.f32.xlu0 %v83
  %v85 = vpop.xlane.xlu0 %84
  %v86 = vsel %vm82, %v81, 0.0
  %87 = vadd.xlane.f32.xlu0 %v86
  %v88 = vpop.xlane.xlu0 %87
  %v89 = vmul.f32 %v80, %v80
  %v90 = vmul.f32 %v81, %v81
  %v91 = vsel %vm82, %v89, 0.0
  %92 = vadd.xlane.f32.xlu0 %v91
  %v93 = vpop.xlane.xlu0 %92
  %v94 = vsel %vm82, %v90, 0.0
  %95 = vadd.xlane.f32.xlu0 %v94
  %v96 = vpop.xlane.xlu0 %95
  %v97 = vmul.f32 %v85, 0.03125
  %v98 = vmul.f32 %v88, 0.03125
  %v99 = vmul.f32 %v93, 0.03125
  %v100 = vmul.f32 %v96, 0.03125
  %v101 = vmul.f32 %v97, %v97
  %v102 = vmul.f32 %v98, %v98
  %v103 = vsub.f32 %v99, %v101
  %v104 = vsub.f32 %v100, %v102
  %v105 = vmax.f32 %v103, 0.0
  %v106 = vmax.f32 %v104, 0.0
  %v107 = vsub.f32 %v80, %v97
  %v108 = vsub.f32 %v81, %v98
  %v109 = vadd.f32 %v105, 1e-05
  %v110 = vadd.f32 %v106, 1e-05
  %v111 = vrsqrt.pop %v109
  %v112 = vrsqrt.pop %v110
  %v113 = vmul.f32 %v107, %v111
  %v114 = vmul.f32 %v108, %v112
  %s115 = sadd.s32 0, 0
  %v116 = vlaneseq
  %v117 = vshrl.u32 %v116, 7
  %v118 = vadd.s32 %v117, 8
  %s119 = smul.u32 %s115, 16
  %v120 = vstv %s119
  %v121 = vadd.s32 %v117, %v120
  %v122 = vadd.s32 %v118, %v120
  %vm123 = vcmp.lt.s32.totalorder %v121, 16
  %vm124 = vcmp.lt.s32.totalorder %v122, 16
  %v125 = vsel %vm123, 1, 0
  %v126 = vsel %vm124, 1, 0
  %vm127 = vcmp.eq.s32.totalorder %v125, 1
  %vm128 = vcmp.eq.s32.totalorder %v126, 1
  %v129 = vsel %vm127, %v113, 0.0
  %v130 = vsel %vm128, %v114, 0.0
  %v131 = vpack.c.bf16 %v130, %v129
  %v132 = vld [vmem:[%s57] sm:$0x1]
  %v133 = vlaneseq
  %v134 = vshrl.u32 %v133, 7
  %v135 = vsub.s32 0, %v134
  %v136 = vrot.slane %v132, %v135
  %vm137 = vcmp.eq.s32.totalorder %v117, %v136
  %v138 = vsel %vm137, 1, 0
  %v139 = vcvt.s32.f32 %v138
  %v140 = vpack.c.bf16 %v139, %v139
  %v141 = vld [vmem:[#allocation2] sm:$0x3]
  %vm142 = vcmask 130048
  %v144 = vsel %vm142, %v140, 0
  %146 = vmatprep.subr.bf16.mxu0 0
  %147 = vmatpush1.bf16.msra.mxu0 %v131
  %148 = vmatprep.subr.bf16.mxu0 0
  %149 = vmatpush1.bf16.msra.mxu0 0
  %150 = vmatprep.subr.bf16.mxu0 0
  %151 = vmatpush1.bf16.msra.mxu0 0
  %152 = vmatprep.subr.bf16.mxu0 0
  %153 = vmatpush1.bf16.msra.mxu0 0
  %154 = vmatprep.subr.bf16.mxu0 0
  %155 = vmatpush1.bf16.msra.mxu0 0
  %156 = vmatprep.subr.bf16.mxu0 0
  %157 = vmatpush1.bf16.msra.mxu0 0
  %158 = vmatprep.subr.bf16.mxu0 0
  %159 = vmatpush1.bf16.msra.mxu0 0
  %160 = vmatprep.subr.bf16.mxu0 0
  %161 = vmatpush1.bf16.msra.mxu0 0
  %162 = vmatprep.subr.bf16.mxu0 0
  %163 = vmatpush1.bf16.msra.mxu0 0
  %164 = vmatprep.subr.bf16.mxu0 0
  %165 = vmatpush1.bf16.msra.mxu0 0
  %166 = vmatprep.subr.bf16.mxu0 0
  %167 = vmatpush1.bf16.msra.mxu0 0
  %168 = vmatprep.subr.bf16.mxu0 0
  %169 = vmatpush1.bf16.msra.mxu0 0
  %170 = vmatprep.subr.bf16.mxu0 0
  %171 = vmatpush1.bf16.msra.mxu0 0
  %172 = vmatprep.subr.bf16.mxu0 0
  %173 = vmatpush1.bf16.msra.mxu0 0
  %174 = vmatprep.subr.bf16.mxu0 0
  %175 = vmatpush1.bf16.msra.mxu0 0
  %176 = vmatprep.subr.bf16.mxu0 0
  %177 = vmatpush1.bf16.msra.mxu0 0
  %178 = vmatprep.mubr.bf16.mxu0 0
  %179 = vmatmul.mubr.bf16.gmra.mrb[0].mxu0 %v144
  %v180 = vpop.f32.mrb[0].mxu0
  %v181 = vadd.f32 0.0, %v180
  %v182 = vpop.f32.mrb[0].mxu0
  %v183 = vpop.f32.mrb[0].mxu0
  %v184 = vpop.f32.mrb[0].mxu0
  %185 = vdwg.mxu0
  %v186 = vadd.f32 %v141, %v181
  %vm187 = vcmask 254976
  %188 = vst.msk [vmem:[#allocation2] sm:$0x3] %vm187, %v186
  // Predicated region
  $region22: #{tpu_custom_call.1} parent=0 // pred_check
    %p189 = pneg %p74
  $region23: #{tpu_custom_call.1} parent=0 // pred_check_branch
    %191 = sbr.rel (%p189) target = $region25
  $region24: #{tpu_custom_call.1} parent=0 // pred_region
    %v192 = vld [vmem:[#allocation2] sm:$0x3]
    %v193 = vld [vmem:[%s2] sm:$0x3]
    %195 = vset.pattern.permute.xlu0 0
    %196 = vperm.xlu0 %195, %v193
    %v197 = vpop.permute.xlu0 %196
    %v199 = vmul.f32 %v192, %v197
    %v200 = vld [vmem:[%s3] sm:$0xff]
    %v201 = vld [vmem:[%s3 + $0x8] sm:$0xff]
    %v202 = vld [vmem:[%s3 + $0x10] sm:$0xff]
    %v203 = vld [vmem:[%s3 + $0x18] sm:$0xff]
    %v205 = vsel %vm82, %v199, 0
    %207 = vmatprep.subr.mxu0 0.0
    %208 = vmatpush1.msra.mxu0 %v200
    %209 = vmatprep.subr.mxu0 0.0
    %210 = vmatpush1.msra.mxu0 %v201
    %211 = vmatprep.subr.mxu0 0.0
    %212 = vmatpush1.msra.mxu0 %v202
    %213 = vmatprep.subr.mxu0 0.0
    %214 = vmatpush1.msra.mxu0 %v203
    %215 = vmatprep.subr.mxu0 0.0
    %216 = vmatpush1.msra.mxu0 0.0
    %217 = vmatprep.subr.mxu0 0.0
    %218 = vmatpush1.msra.mxu0 0.0
    %219 = vmatprep.subr.mxu0 0.0
    %220 = vmatpush1.msra.mxu0 0.0
    %221 = vmatprep.subr.mxu0 0.0
    %222 = vmatpush1.msra.mxu0 0.0
    %223 = vmatprep.subr.mxu0 0.0
    %224 = vmatpush1.msra.mxu0 0.0
    %225 = vmatprep.subr.mxu0 0.0
    %226 = vmatpush1.msra.mxu0 0.0
    %227 = vmatprep.subr.mxu0 0.0
    %228 = vmatpush1.msra.mxu0 0.0
    %229 = vmatprep.subr.mxu0 0.0
    %230 = vmatpush1.msra.mxu0 0.0
    %231 = vmatprep.subr.mxu0 0.0
    %232 = vmatpush1.msra.mxu0 0.0
    %233 = vmatprep.subr.mxu0 0.0
    %234 = vmatpush1.msra.mxu0 0.0
    %235 = vmatprep.subr.mxu0 0.0
    %236 = vmatpush1.msra.mxu0 0.0
    %237 = vmatprep.subr.mxu0 0.0
    %238 = vmatpush1.msra.mxu0 0.0
    %239 = vmatprep.subr.mxu0 0.0
    %240 = vmatpush1.msra.mxu0 0.0
    %241 = vmatprep.subr.mxu0 0.0
    %242 = vmatpush1.msra.mxu0 0.0
    %243 = vmatprep.subr.mxu0 0.0
    %244 = vmatpush1.msra.mxu0 0.0
    %245 = vmatprep.subr.mxu0 0.0
    %246 = vmatpush1.msra.mxu0 0.0
    %247 = vmatprep.subr.mxu0 0.0
    %248 = vmatpush1.msra.mxu0 0.0
    %249 = vmatprep.subr.mxu0 0.0
    %250 = vmatpush1.msra.mxu0 0.0
    %251 = vmatprep.subr.mxu0 0.0
    %252 = vmatpush1.msra.mxu0 0.0
    %253 = vmatprep.subr.mxu0 0.0
    %254 = vmatpush1.msra.mxu0 0.0
    %255 = vmatprep.subr.mxu0 0.0
    %256 = vmatpush1.msra.mxu0 0.0
    %257 = vmatprep.subr.mxu0 0.0
    %258 = vmatpush1.msra.mxu0 0.0
    %259 = vmatprep.subr.mxu0 0.0
    %260 = vmatpush1.msra.mxu0 0.0
    %261 = vmatprep.subr.mxu0 0.0
    %262 = vmatpush1.msra.mxu0 0.0
    %263 = vmatprep.subr.mxu0 0.0
    %264 = vmatpush1.msra.mxu0 0.0
    %265 = vmatprep.subr.mxu0 0.0
    %266 = vmatpush1.msra.mxu0 0.0
    %267 = vmatprep.subr.mxu0 0.0
    %268 = vmatpush1.msra.mxu0 0.0
    %269 = vmatprep.subr.mxu0 0.0
    %270 = vmatpush1.msra.mxu0 0.0
    %271 = vmatprep.mubr.f32.mxu0 0.0
    %272 = vmatmul.mubr.f32.gmra.mrb[0].mxu0 %v205
    %v273 = vpop.f32.mrb[0].mxu0
    %v274 = vadd.f32 0.0, %v273
    %v275 = vpop.f32.mrb[0].mxu0
    %276 = vdwg.mxu0
    %vm277 = vcmask 1024
    %278 = vst.msk [vmem:[%s4] sm:$0x3] %vm277, %v274
  $region25: #{tpu_custom_call.1} parent=0 // pred_fallthru
    _
  // Predicated region
  $region26: #{tpu_custom_call.1} parent=0 // pred_check
    _
  $region27: #{tpu_custom_call.1} parent=0 // pred_check_branch
    %280 = sbr.rel (0) target = $region29
  $region28: #{tpu_custom_call.1} parent=0 // pred_region
    _
  $region29: #{tpu_custom_call.1} parent=0 // pred_fallthru
    _
  // Predicated region
  $region30: #{tpu_custom_call.1} parent=0 // pred_check
    _
  $region31: #{tpu_custom_call.1} parent=0 // pred_check_branch
    %282 = sbr.rel (0) target = $region33
  $region32: #{tpu_custom_call.1} parent=0 // pred_region
    _
  $region33: #{tpu_custom_call.1} parent=0 // pred_fallthru
    _

</llo_original>
